<compile_context>
chip_gen: v6e
topology: v6e:2x2x1
jax: 0.10.0
libtpu: 0.0.40
codegen_flags: <defaults>
</compile_context>

<pallas_src>
import jax
import jax.numpy as jnp
from jax import lax
from jax.experimental import pallas as pl
from jax.experimental.pallas import tpu as pltpu

# ----------------------------------------------------------------------------
# Deterministic module "parameters" — the defaults of PointLights / Materials /
# OpenGLPerspectiveCameras used by PhongShader.__init__ (synthetic, in-script).
# ----------------------------------------------------------------------------
LIGHT_AMBIENT = (0.5, 0.5, 0.5)     # PointLights.ambient_color
LIGHT_DIFFUSE = (0.3, 0.3, 0.3)     # PointLights.diffuse_color
LIGHT_SPECULAR = (0.2, 0.2, 0.2)    # PointLights.specular_color
LIGHT_LOCATION = (0.0, 1.0, 0.0)    # PointLights.location
MAT_AMBIENT = (1.0, 1.0, 1.0)       # Materials.ambient_color
MAT_DIFFUSE = (1.0, 1.0, 1.0)       # Materials.diffuse_color
MAT_SPECULAR = (1.0, 1.0, 1.0)      # Materials.specular_color
SHININESS = 64                      # Materials.shininess (integer -> exact integer_pow)
CAMERA_POSITION = (0.0, 0.0, 0.0)   # OpenGLPerspectiveCameras default (R=I, T=0) camera center
EPS = 1e-6                          # F.normalize eps

LANES = 128                         # lane (fast) axis width
ROW_CHUNK = 8                       # rows per inner strip: every temp = 1 vreg (no VMEM spills)
TR_MIN = 64                         # >= 8K px per grid step (amortise ~0.35us step overhead)
TR_MAX = 512                        # per-step ~3.2 MiB, double-buffered ~6.3 MiB < all VMEM limits
TARGET_STEPS = 4                    # keep >= 2*num_cores grid steps for v7x megacore when possible


def _phong_kernel(attr_ref, out_ref):
    """Pure per-pixel Phong shading on lane-dense slabs.

    attr_ref : (9, TR, 128) f32  interpolated per-pixel attributes:
               0..2 = pixel coords, 3..5 = pixel normals, 6..8 = texel RGB.
               Background pixels arrive as all-zero (zeroed barycentrics), which
               makes the Phong math collapse to RGB = 0 exactly like pytorch3d.
    out_ref  : (3, TR, 128) f32  shaded RGB (alpha is added in the wrapper).
    """
    tr = attr_ref.shape[1]
    n_chunks = tr // ROW_CHUNK

    def chunk_body(ci, carry):
        r0 = pl.multiple_of(ci * ROW_CHUNK, ROW_CHUNK)
        sl = pl.ds(r0, ROW_CHUNK)

        coords = tuple(attr_ref[c, sl, :] for c in range(3))        # (8, 128) each
        normals = tuple(attr_ref[3 + c, sl, :] for c in range(3))
        texels = tuple(attr_ref[6 + c, sl, :] for c in range(3))

        def normalize3(v):
            # F.normalize(p=2, dim=-1, eps=1e-6): x / max(||x||, eps)
            # == x * rsqrt(max(||x||^2, eps^2))   (sqrt is monotone); rsqrt -> EUP slot.
            ssq = v[0] * v[0] + v[1] * v[1] + v[2] * v[2]
            inv = lax.rsqrt(jnp.maximum(ssq, EPS * EPS))
            return tuple(vc * inv for vc in v)

        n_hat = normalize3(normals)
        direction = normalize3(tuple(LIGHT_LOCATION[c] - coords[c] for c in range(3)))
        view_dir = normalize3(tuple(CAMERA_POSITION[c] - coords[c] for c in range(3)))

        # diffuse term
        cos = (n_hat[0] * direction[0] + n_hat[1] * direction[1]
               + n_hat[2] * direction[2])
        diffuse_angle = jnp.maximum(cos, 0.0)

        # specular term
        reflect = tuple(2.0 * cos * n_hat[c] - direction[c] for c in range(3))
        spec_cos = (view_dir[0] * reflect[0] + view_dir[1] * reflect[1]
                    + view_dir[2] * reflect[2])
        alpha_s = jnp.where(cos > 0.0, jnp.maximum(spec_cos, 0.0), 0.0)
        spec_pow = lax.integer_pow(alpha_s, SHININESS)

        # colors = (ambient + diffuse) * texels + specular  (per channel)
        for c in range(3):
            ambient_c = MAT_AMBIENT[c] * LIGHT_AMBIENT[c]
            diffuse_c = MAT_DIFFUSE[c] * LIGHT_DIFFUSE[c] * diffuse_angle
            specular_c = MAT_SPECULAR[c] * LIGHT_SPECULAR[c] * spec_pow
            out_ref[c, sl, :] = (ambient_c + diffuse_c) * texels[c] + specular_c
        return carry

    lax.fori_loop(0, n_chunks, chunk_body, 0)


def phong_shader_forward(verts, faces, verts_normals, verts_colors,
                         pix_to_face, bary_coords):
    """JAX glue reproducing PhongShader.forward.

    verts         : (V, 3) f32         meshes.verts_packed()
    faces         : (F, 3) i32         meshes.faces_packed()
    verts_normals : (V, 3) f32         meshes.verts_normals_packed()
    verts_colors  : (V, 3) f32         meshes.textures vertex RGB
    pix_to_face   : (N, H, W, K) i32   fragments.pix_to_face (-1 = background)
    bary_coords   : (N, H, W, K, 3) f32 fragments.bary_coords
    returns images: (N, H, W, 4) f32
    """
    N, H, W, K = pix_to_face.shape
    P = N * H * W

    # Tiny per-face tables, one per triangle vertex: (3 vertices, 9 channels, F).
    fv = verts[faces]                # (F, 3, 3)
    fn = verts_normals[faces]        # (F, 3, 3)
    fc = verts_colors[faces]         # (F, 3, 3)
    tab = jnp.concatenate([fv, fn, fc], axis=-1).astype(jnp.float32)   # (F, 3, 9)
    tab = jnp.transpose(tab, (1, 2, 0))                                # (3, 9, F)  (small)

    # Only the closest face (K = 0) contributes to hard_rgb_blend's output.
    p2f0 = pix_to_face[..., 0].reshape(P)
    fg = p2f0 >= 0
    idx = jnp.where(fg, p2f0, 0)                                       # clamp -1 -> 0
    bary0 = bary_coords[..., 0, :].reshape(P, 3).astype(jnp.float32)
    # Zeroed barycentrics for background pixels <=> pytorch3d's pixel_vals[mask] = 0:
    # zero coords/normals/texels make the Phong math produce exactly RGB = 0.
    bary0 = jnp.where(fg[:, None], bary0, 0.0)

    # Pixel axis as (rows, 128): lane-dense, full sublanes.
    rows = -(-P // LANES)
    rows8 = ((rows + 7) // 8) * 8
    steps = max(1, min(TARGET_STEPS, rows8 // TR_MIN))
    tr = -(-rows8 // steps)
    tr = ((tr + 7) // 8) * 8
    tr = min(tr, TR_MAX)
    tr = min(tr, rows8)
    Rp = -(-rows8 // tr) * tr
    Pp = Rp * LANES

    idx = jnp.pad(idx, (0, Pp - P))
    bary0 = jnp.pad(bary0, ((0, Pp - P), (0, 0)))

    # TODO(synk): the per-pixel face-attribute gather is data-dependent and has no
    # BlockSpec / efficient TPU in-kernel equivalent (no vector gather unit; a one-hot
    # MXU matmul only pays off for very small F).  It stays in XLA, but the barycentric
    # contraction is fused into it so only the 9 interpolated channels (36 B/px) are
    # materialised for the kernel instead of 27 raw face attributes (108 B/px).
    interp = (jnp.take(tab[0], idx, axis=1) * bary0[:, 0][None, :]
              + jnp.take(tab[1], idx, axis=1) * bary0[:, 1][None, :]
              + jnp.take(tab[2], idx, axis=1) * bary0[:, 2][None, :])   # (9, Pp) f32
    interp = interp.reshape(9, Rp, LANES)                               # free reshape

    rgb = pl.pallas_call(
        _phong_kernel,
        out_shape=jax.ShapeDtypeStruct((3, Rp, LANES), jnp.float32),
        grid=(Rp // tr,),
        in_specs=[pl.BlockSpec((9, tr, LANES), lambda i: (0, i, 0))],
        out_specs=pl.BlockSpec((3, tr, LANES), lambda i: (0, i, 0)),
        compiler_params=pltpu.CompilerParams(dimension_semantics=("parallel",)),
    )(interp)

    # hard_rgb_blend (pytorch3d 0.1.x): RGB = colors[..., 0, :], alpha = 1.0 everywhere.
    rgb = rgb.reshape(3, Pp)[:, :P]
    images = jnp.concatenate(
        [jnp.transpose(rgb, (1, 0)), jnp.ones((P, 1), jnp.float32)], axis=-1)
    return images.reshape(N, H, W, 4)


if __name__ == "__main__":
    key = jax.random.PRNGKey(0)
    kv, kf, kn, kc, kp, kb = jax.random.split(key, 6)

    # Small synthetic mesh + rasterizer fragments.
    N, H, W, K = 2, 16, 16, 2
    V, F = 32, 48

    verts = jax.random.normal(kv, (V, 3), jnp.float32)
    faces = jax.random.randint(kf, (F, 3), 0, V, dtype=jnp.int32)
    vn = jax.random.normal(kn, (V, 3), jnp.float32)
    verts_normals = vn / jnp.linalg.norm(vn, axis=-1, keepdims=True)
    verts_colors = jax.random.uniform(kc, (V, 3), jnp.float32)

    pix_to_face = jax.random.randint(kp, (N, H, W, K), -1, F, dtype=jnp.int32)
    bw = jax.random.uniform(kb, (N, H, W, K, 3), jnp.float32, minval=0.05, maxval=1.0)
    bary_coords = bw / jnp.sum(bw, axis=-1, keepdims=True)

    fwd = jax.jit(phong_shader_forward)
    images = fwd(verts, faces, verts_normals, verts_colors, pix_to_face, bary_coords)
    jax.block_until_ready(images)

    assert images.shape == (N, H, W, 4) and images.dtype == jnp.float32
    assert bool(jnp.all(jnp.isfinite(images)))
    print("KERNEL_OK")
</pallas_src>

<mosaic_0001>
module attributes {stable_mosaic.version = 11 : i64} {
  func.func @_phong_kernel(%arg0: i32, %arg1: memref<9x8x128xf32, #tpu.memory_space<vmem>>, %arg2: memref<3x8x128xf32, #tpu.memory_space<vmem>>) attributes {dimension_semantics = [#tpu.dimension_semantics<parallel>], iteration_bounds = array<i64: 1>, scalar_prefetch = 0 : i64, scratch_operands = 0 : i64, tpu.core_type = #tpu.core_type<tc>, window_params = [{transform_indices = @transform_0, window_bounds = array<i64: 9, 8, 128>}, {transform_indices = @transform_1, window_bounds = array<i64: 3, 8, 128>}]} {
    %c0_i32 = arith.constant 0 : i32
    %c8_i32 = arith.constant 8 : i32
    %0 = arith.muli %c0_i32, %c8_i32 : i32
    %1 = tpu.assume_multiple %0, 8 : i32
    %c0 = arith.constant 0 : index
    %2 = arith.index_cast %1 : i32 to index
    %c0_0 = arith.constant 0 : index
    %3 = vector.load %arg1[%c0, %2, %c0_0] : memref<9x8x128xf32, #tpu.memory_space<vmem>>, vector<1x8x128xf32>
    %4 = vector.shape_cast %3 : vector<1x8x128xf32> to vector<8x128xf32>
    %c1 = arith.constant 1 : index
    %5 = arith.index_cast %1 : i32 to index
    %c0_1 = arith.constant 0 : index
    %6 = vector.load %arg1[%c1, %5, %c0_1] : memref<9x8x128xf32, #tpu.memory_space<vmem>>, vector<1x8x128xf32>
    %7 = vector.shape_cast %6 : vector<1x8x128xf32> to vector<8x128xf32>
    %c2 = arith.constant 2 : index
    %8 = arith.index_cast %1 : i32 to index
    %c0_2 = arith.constant 0 : index
    %9 = vector.load %arg1[%c2, %8, %c0_2] : memref<9x8x128xf32, #tpu.memory_space<vmem>>, vector<1x8x128xf32>
    %10 = vector.shape_cast %9 : vector<1x8x128xf32> to vector<8x128xf32>
    %c3 = arith.constant 3 : index
    %11 = arith.index_cast %1 : i32 to index
    %c0_3 = arith.constant 0 : index
    %12 = vector.load %arg1[%c3, %11, %c0_3] : memref<9x8x128xf32, #tpu.memory_space<vmem>>, vector<1x8x128xf32>
    %13 = vector.shape_cast %12 : vector<1x8x128xf32> to vector<8x128xf32>
    %c4 = arith.constant 4 : index
    %14 = arith.index_cast %1 : i32 to index
    %c0_4 = arith.constant 0 : index
    %15 = vector.load %arg1[%c4, %14, %c0_4] : memref<9x8x128xf32, #tpu.memory_space<vmem>>, vector<1x8x128xf32>
    %16 = vector.shape_cast %15 : vector<1x8x128xf32> to vector<8x128xf32>
    %c5 = arith.constant 5 : index
    %17 = arith.index_cast %1 : i32 to index
    %c0_5 = arith.constant 0 : index
    %18 = vector.load %arg1[%c5, %17, %c0_5] : memref<9x8x128xf32, #tpu.memory_space<vmem>>, vector<1x8x128xf32>
    %19 = vector.shape_cast %18 : vector<1x8x128xf32> to vector<8x128xf32>
    %c6 = arith.constant 6 : index
    %20 = arith.index_cast %1 : i32 to index
    %c0_6 = arith.constant 0 : index
    %21 = vector.load %arg1[%c6, %20, %c0_6] : memref<9x8x128xf32, #tpu.memory_space<vmem>>, vector<1x8x128xf32>
    %22 = vector.shape_cast %21 : vector<1x8x128xf32> to vector<8x128xf32>
    %c7 = arith.constant 7 : index
    %23 = arith.index_cast %1 : i32 to index
    %c0_7 = arith.constant 0 : index
    %24 = vector.load %arg1[%c7, %23, %c0_7] : memref<9x8x128xf32, #tpu.memory_space<vmem>>, vector<1x8x128xf32>
    %25 = vector.shape_cast %24 : vector<1x8x128xf32> to vector<8x128xf32>
    %c8 = arith.constant 8 : index
    %26 = arith.index_cast %1 : i32 to index
    %c0_8 = arith.constant 0 : index
    %27 = vector.load %arg1[%c8, %26, %c0_8] : memref<9x8x128xf32, #tpu.memory_space<vmem>>, vector<1x8x128xf32>
    %28 = vector.shape_cast %27 : vector<1x8x128xf32> to vector<8x128xf32>
    %29 = arith.mulf %13, %13 : vector<8x128xf32>
    %30 = arith.mulf %16, %16 : vector<8x128xf32>
    %31 = arith.addf %29, %30 : vector<8x128xf32>
    %32 = arith.mulf %19, %19 : vector<8x128xf32>
    %33 = arith.addf %31, %32 : vector<8x128xf32>
    %cst = arith.constant 9.99999996E-13 : f32
    %34 = vector.broadcast %cst : f32 to vector<8x128xf32>
    %35 = arith.maximumf %33, %34 : vector<8x128xf32>
    %36 = math.rsqrt %35 : vector<8x128xf32>
    %37 = arith.mulf %13, %36 : vector<8x128xf32>
    %38 = arith.mulf %16, %36 : vector<8x128xf32>
    %39 = arith.mulf %19, %36 : vector<8x128xf32>
    %cst_9 = arith.constant 0.000000e+00 : f32
    %40 = vector.broadcast %cst_9 : f32 to vector<8x128xf32>
    %41 = arith.subf %40, %4 : vector<8x128xf32>
    %cst_10 = arith.constant 1.000000e+00 : f32
    %42 = vector.broadcast %cst_10 : f32 to vector<8x128xf32>
    %43 = arith.subf %42, %7 : vector<8x128xf32>
    %cst_11 = arith.constant 0.000000e+00 : f32
    %44 = vector.broadcast %cst_11 : f32 to vector<8x128xf32>
    %45 = arith.subf %44, %10 : vector<8x128xf32>
    %46 = arith.mulf %41, %41 : vector<8x128xf32>
    %47 = arith.mulf %43, %43 : vector<8x128xf32>
    %48 = arith.addf %46, %47 : vector<8x128xf32>
    %49 = arith.mulf %45, %45 : vector<8x128xf32>
    %50 = arith.addf %48, %49 : vector<8x128xf32>
    %cst_12 = arith.constant 9.99999996E-13 : f32
    %51 = vector.broadcast %cst_12 : f32 to vector<8x128xf32>
    %52 = arith.maximumf %50, %51 : vector<8x128xf32>
    %53 = math.rsqrt %52 : vector<8x128xf32>
    %54 = arith.mulf %41, %53 : vector<8x128xf32>
    %55 = arith.mulf %43, %53 : vector<8x128xf32>
    %56 = arith.mulf %45, %53 : vector<8x128xf32>
    %cst_13 = arith.constant 0.000000e+00 : f32
    %57 = vector.broadcast %cst_13 : f32 to vector<8x128xf32>
    %58 = arith.subf %57, %4 : vector<8x128xf32>
    %cst_14 = arith.constant 0.000000e+00 : f32
    %59 = vector.broadcast %cst_14 : f32 to vector<8x128xf32>
    %60 = arith.subf %59, %7 : vector<8x128xf32>
    %cst_15 = arith.constant 0.000000e+00 : f32
    %61 = vector.broadcast %cst_15 : f32 to vector<8x128xf32>
    %62 = arith.subf %61, %10 : vector<8x128xf32>
    %63 = arith.mulf %58, %58 : vector<8x128xf32>
    %64 = arith.mulf %60, %60 : vector<8x128xf32>
    %65 = arith.addf %63, %64 : vector<8x128xf32>
    %66 = arith.mulf %62, %62 : vector<8x128xf32>
    %67 = arith.addf %65, %66 : vector<8x128xf32>
    %cst_16 = arith.constant 9.99999996E-13 : f32
    %68 = vector.broadcast %cst_16 : f32 to vector<8x128xf32>
    %69 = arith.maximumf %67, %68 : vector<8x128xf32>
    %70 = math.rsqrt %69 : vector<8x128xf32>
    %71 = arith.mulf %58, %70 : vector<8x128xf32>
    %72 = arith.mulf %60, %70 : vector<8x128xf32>
    %73 = arith.mulf %62, %70 : vector<8x128xf32>
    %74 = arith.mulf %37, %54 : vector<8x128xf32>
    %75 = arith.mulf %38, %55 : vector<8x128xf32>
    %76 = arith.addf %74, %75 : vector<8x128xf32>
    %77 = arith.mulf %39, %56 : vector<8x128xf32>
    %78 = arith.addf %76, %77 : vector<8x128xf32>
    %cst_17 = arith.constant 0.000000e+00 : f32
    %79 = vector.broadcast %cst_17 : f32 to vector<8x128xf32>
    %80 = arith.maximumf %78, %79 : vector<8x128xf32>
    %cst_18 = arith.constant 2.000000e+00 : f32
    %81 = vector.broadcast %cst_18 : f32 to vector<8x128xf32>
    %82 = arith.mulf %81, %78 : vector<8x128xf32>
    %83 = arith.mulf %82, %37 : vector<8x128xf32>
    %84 = arith.subf %83, %54 : vector<8x128xf32>
    %cst_19 = arith.constant 2.000000e+00 : f32
    %85 = vector.broadcast %cst_19 : f32 to vector<8x128xf32>
    %86 = arith.mulf %85, %78 : vector<8x128xf32>
    %87 = arith.mulf %86, %38 : vector<8x128xf32>
    %88 = arith.subf %87, %55 : vector<8x128xf32>
    %cst_20 = arith.constant 2.000000e+00 : f32
    %89 = vector.broadcast %cst_20 : f32 to vector<8x128xf32>
    %90 = arith.mulf %89, %78 : vector<8x128xf32>
    %91 = arith.mulf %90, %39 : vector<8x128xf32>
    %92 = arith.subf %91, %56 : vector<8x128xf32>
    %93 = arith.mulf %71, %84 : vector<8x128xf32>
    %94 = arith.mulf %72, %88 : vector<8x128xf32>
    %95 = arith.addf %93, %94 : vector<8x128xf32>
    %96 = arith.mulf %73, %92 : vector<8x128xf32>
    %97 = arith.addf %95, %96 : vector<8x128xf32>
    %cst_21 = arith.constant 0.000000e+00 : f32
    %98 = vector.broadcast %cst_21 : f32 to vector<8x128xf32>
    %99 = arith.cmpf ogt, %78, %98 : vector<8x128xf32>
    %cst_22 = arith.constant 0.000000e+00 : f32
    %100 = vector.broadcast %cst_22 : f32 to vector<8x128xf32>
    %101 = arith.maximumf %97, %100 : vector<8x128xf32>
    %cst_23 = arith.constant 0.000000e+00 : f32
    %102 = vector.broadcast %cst_23 : f32 to vector<8x128xf32>
    %103 = arith.select %99, %101, %102 : vector<8x128xi1>, vector<8x128xf32>
    %104 = arith.mulf %103, %103 : vector<8x128xf32>
    %105 = arith.mulf %104, %104 : vector<8x128xf32>
    %106 = arith.mulf %105, %105 : vector<8x128xf32>
    %107 = arith.mulf %106, %106 : vector<8x128xf32>
    %108 = arith.mulf %107, %107 : vector<8x128xf32>
    %109 = arith.mulf %108, %108 : vector<8x128xf32>
    %cst_24 = arith.constant 3.000000e-01 : f32
    %110 = vector.broadcast %cst_24 : f32 to vector<8x128xf32>
    %111 = arith.mulf %110, %80 : vector<8x128xf32>
    %cst_25 = arith.constant 2.000000e-01 : f32
    %112 = vector.broadcast %cst_25 : f32 to vector<8x128xf32>
    %113 = arith.mulf %112, %109 : vector<8x128xf32>
    %cst_26 = arith.constant 5.000000e-01 : f32
    %114 = vector.broadcast %cst_26 : f32 to vector<8x128xf32>
    %115 = arith.addf %114, %111 : vector<8x128xf32>
    %116 = arith.mulf %115, %22 : vector<8x128xf32>
    %117 = arith.addf %116, %113 : vector<8x128xf32>
    %c0_27 = arith.constant 0 : index
    %118 = arith.index_cast %1 : i32 to index
    %c0_28 = arith.constant 0 : index
    %119 = vector.load %arg2[%c0_27, %118, %c0_28] : memref<3x8x128xf32, #tpu.memory_space<vmem>>, vector<1x8x128xf32>
    %120 = vector.shape_cast %119 : vector<1x8x128xf32> to vector<8x128xf32>
    %121 = vector.shape_cast %117 : vector<8x128xf32> to vector<1x8x128xf32>
    tpu.vector_store %arg2[%c0_27, %118, %c0_28], %121 {strides = array<i32>} : memref<3x8x128xf32, #tpu.memory_space<vmem>>, vector<1x8x128xf32>,
    %cst_29 = arith.constant 3.000000e-01 : f32
    %122 = vector.broadcast %cst_29 : f32 to vector<8x128xf32>
    %123 = arith.mulf %122, %80 : vector<8x128xf32>
    %cst_30 = arith.constant 2.000000e-01 : f32
    %124 = vector.broadcast %cst_30 : f32 to vector<8x128xf32>
    %125 = arith.mulf %124, %109 : vector<8x128xf32>
    %cst_31 = arith.constant 5.000000e-01 : f32
    %126 = vector.broadcast %cst_31 : f32 to vector<8x128xf32>
    %127 = arith.addf %126, %123 : vector<8x128xf32>
    %128 = arith.mulf %127, %25 : vector<8x128xf32>
    %129 = arith.addf %128, %125 : vector<8x128xf32>
    %c1_32 = arith.constant 1 : index
    %130 = arith.index_cast %1 : i32 to index
    %c0_33 = arith.constant 0 : index
    %131 = vector.load %arg2[%c1_32, %130, %c0_33] : memref<3x8x128xf32, #tpu.memory_space<vmem>>, vector<1x8x128xf32>
    %132 = vector.shape_cast %131 : vector<1x8x128xf32> to vector<8x128xf32>
    %133 = vector.shape_cast %129 : vector<8x128xf32> to vector<1x8x128xf32>
    tpu.vector_store %arg2[%c1_32, %130, %c0_33], %133 {strides = array<i32>} : memref<3x8x128xf32, #tpu.memory_space<vmem>>, vector<1x8x128xf32>,
    %cst_34 = arith.constant 3.000000e-01 : f32
    %134 = vector.broadcast %cst_34 : f32 to vector<8x128xf32>
    %135 = arith.mulf %134, %80 : vector<8x128xf32>
    %cst_35 = arith.constant 2.000000e-01 : f32
    %136 = vector.broadcast %cst_35 : f32 to vector<8x128xf32>
    %137 = arith.mulf %136, %109 : vector<8x128xf32>
    %cst_36 = arith.constant 5.000000e-01 : f32
    %138 = vector.broadcast %cst_36 : f32 to vector<8x128xf32>
    %139 = arith.addf %138, %135 : vector<8x128xf32>
    %140 = arith.mulf %139, %28 : vector<8x128xf32>
    %141 = arith.addf %140, %137 : vector<8x128xf32>
    %c2_37 = arith.constant 2 : index
    %142 = arith.index_cast %1 : i32 to index
    %c0_38 = arith.constant 0 : index
    %143 = vector.load %arg2[%c2_37, %142, %c0_38] : memref<3x8x128xf32, #tpu.memory_space<vmem>>, vector<1x8x128xf32>
    %144 = vector.shape_cast %143 : vector<1x8x128xf32> to vector<8x128xf32>
    %145 = vector.shape_cast %141 : vector<8x128xf32> to vector<1x8x128xf32>
    tpu.vector_store %arg2[%c2_37, %142, %c0_38], %145 {strides = array<i32>} : memref<3x8x128xf32, #tpu.memory_space<vmem>>, vector<1x8x128xf32>,
    %c1_i32 = arith.constant 1 : i32
    return
  }
  func.func @transform_0(%arg0: i32) -> (i32, i32, i32) {
    %c0_i32 = arith.constant 0 : i32
    %c0_i32_0 = arith.constant 0 : i32
    %c0_i32_1 = arith.constant 0 : i32
    return %c0_i32, %arg0, %c0_i32_0 : i32, i32, i32
  }
  func.func @transform_1(%arg0: i32) -> (i32, i32, i32) {
    %c0_i32 = arith.constant 0 : i32
    %c0_i32_0 = arith.constant 0 : i32
    %c0_i32_1 = arith.constant 0 : i32
    return %c0_i32, %arg0, %c0_i32_0 : i32, i32, i32
  }
}

</mosaic_0001>

<llo_original>
// kernel: squeeze.8
$region0: #{squeeze.8}
  %s0 = inlined_call_operand.vmem [shape: s32[2,16,16], index: 0, kind: input, shape index: {}]
  %s1 = inlined_call_operand.vmem [shape: s32[512], index: 1, kind: output, shape index: {}]
  $region1: #{squeeze.8} parent=0
    #allocation0 [shape = 'u8[4096]{0}', space=vmem, size = 0x1000, scoped, tag = 'scoped mem for output reshape']
    %v2 = vld [vmem:[%s0] ss:$8 sm:$0xf]
    %vm3 = vcmask 130048
    %4 = vst.msk [vmem:[#allocation0] sm:$0xf] %vm3, %v2
    %s5 = scalar_lea.vmem %s0, 7
    %v6 = vld [vmem:[%s5] ss:$8 sm:$0xf]
    %7 = vrot.lane.b32.xlu0 %v6, 112
    %v8 = vpop.permute.xlu0 %7
    %vm9 = vcmask 1048448
    %10 = vst.msk [vmem:[#allocation0] sm:$0xf] %vm9, %v8
    %s11 = scalar_lea.vmem %s0, 6
    %v12 = vld [vmem:[%s11] ss:$8 sm:$0xf]
    %13 = vrot.lane.b32.xlu0 %v12, 96
    %v14 = vpop.permute.xlu0 %13
    %vm15 = vcmask 917248
    %16 = vst.msk [vmem:[#allocation0] sm:$0xf] %vm15, %v14
    %s17 = scalar_lea.vmem %s0, 5
    %v18 = vld [vmem:[%s17] ss:$8 sm:$0xf]
    %19 = vrot.lane.b32.xlu0 %v18, 80
    %v20 = vpop.permute.xlu0 %19
    %vm21 = vcmask 786048
    %22 = vst.msk [vmem:[#allocation0] sm:$0xf] %vm21, %v20
    %s23 = scalar_lea.vmem %s0, 4
    %v24 = vld [vmem:[%s23] ss:$8 sm:$0xf]
    %25 = vrot.lane.b32.xlu0 %v24, 64
    %v26 = vpop.permute.xlu0 %25
    %vm27 = vcmask 654848
    %28 = vst.msk [vmem:[#allocation0] sm:$0xf] %vm27, %v26
    %s29 = scalar_lea.vmem %s0, 3
    %v30 = vld [vmem:[%s29] ss:$8 sm:$0xf]
    %31 = vrot.lane.b32.xlu0 %v30, 48
    %v32 = vpop.permute.xlu0 %31
    %vm33 = vcmask 523648
    %34 = vst.msk [vmem:[#allocation0] sm:$0xf] %vm33, %v32
    %s35 = scalar_lea.vmem %s0, 2
    %v36 = vld [vmem:[%s35] ss:$8 sm:$0xf]
    %37 = vrot.lane.b32.xlu0 %v36, 32
    %v38 = vpop.permute.xlu0 %37
    %vm39 = vcmask 392448
    %40 = vst.msk [vmem:[#allocation0] sm:$0xf] %vm39, %v38
    %s41 = scalar_lea.vmem %s0, 1
    %v42 = vld [vmem:[%s41] ss:$8 sm:$0xf]
    %43 = vrot.lane.b32.xlu0 %v42, 16
    %v44 = vpop.permute.xlu0 %43
    %vm45 = vcmask 261248
    %46 = vst.msk [vmem:[#allocation0] sm:$0xf] %vm45, %v44
    %s48 = sshll.u32 1, 4
    %s49 = ssub.s32 %s48, 1
    %v51 = vld [vmem:[#allocation0] sm:%s49]
    %s52 = sshll.u32 1, 4
    %s53 = ssub.s32 %s52, 1
    %54 = vst [vmem:[%s1] sm:%s53] %v51

// kernel: squeeze.9
$region0: #{squeeze.9}
  %s0 = inlined_call_operand.vmem [shape: f32[2,16,16,1,3], index: 0, kind: input, shape index: {}]
  %s1 = inlined_call_operand.vmem [shape: f32[512,3], index: 1, kind: output, shape index: {}]
  $region1: #{squeeze.9} parent=0
    #allocation0 [shape = 'u8[16384]{0}', space=vmem, size = 0x4000, scoped, tag = 'scoped mem for output reshape']
    %v2 = vld [vmem:[%s0] ss:$8 sm:$0xf]
    %v3 = vld [vmem:[%s0] ss:$8 sm:$0xf0]
    %vm4 = vcmask 1047556
    %v5 = vsel %vm4, %v3, %v2
    %vm6 = vcmask 130048
    %7 = vst.msk [vmem:[#allocation0] ss:$8 sm:$0xf] %vm6, %v5
    %s8 = scalar_lea.vmem [#allocation0], 4294967265
    %9 = vst.msk [vmem:[%s8] ss:$8 sm:$0xf0] %vm6, %v5
    %s10 = scalar_lea.vmem %s0, 64
    %v11 = vld [vmem:[%s10] ss:$8 sm:$0xf]
    %vm12 = vcmask 130048
    %s13 = scalar_lea.vmem [#allocation0], 2
    %14 = vst.msk [vmem:[%s13] ss:$8 sm:$0xf] %vm12, %v11
    %s15 = scalar_lea.vmem %s0, 7
    %v16 = vld [vmem:[%s15] sm:$0x1]
    %s17 = scalar_lea.vmem %s0, 38
    %v18 = vld [vmem:[%s17] sm:$0x2]
    %vm19 = vcmask 1041409
    %v20 = vsel %vm19, %v18, %v16
    %s21 = scalar_lea.vmem %s0, 183
    %s22 = smov 12
    %v23 = vld [vmem:[%s21] ss:$-56 sm:%s22]
    %vm24 = vcmask 1043458
    %v25 = vsel %vm24, %v23, %v20
    %s26 = scalar_lea.vmem %s0, 43
    %v27 = vld [vmem:[%s26] sm:$0x10]
    %vm28 = vcmask 1044484
    %v29 = vsel %vm28, %v27, %v25
    %s30 = scalar_lea.vmem %s0, 359
    %s31 = smov 96
    %v32 = vld [vmem:[%s30] ss:$-56 sm:%s31]
    %vm33 = vcmask 1046533
    %v34 = vsel %vm33, %v32, %v29
    %s35 = scalar_lea.vmem %s0, 48
    %v36 = vld [vmem:[%s35] sm:$0x80]
    %vm37 = vcmask 1047559
    %v38 = vsel %vm37, %v36, %v34
    %39 = vrot.lane.b32.xlu0 %v38, 112
    %v40 = vpop.permute.xlu0 %39
    %vm41 = vcmask 1048448
    %42 = vst.msk [vmem:[#allocation0] sm:$0x7] %vm41, %v40
    %s43 = scalar_lea.vmem [#allocation0], 5
    %44 = vst.msk [vmem:[%s43] sm:$0x38] %vm41, %v40
    %s45 = scalar_lea.vmem [#allocation0], 10
    %46 = vst.msk [vmem:[%s45] sm:$0xc0] %vm41, %v40
    %s47 = scalar_lea.vmem %s0, 87
    %s48 = smov 3
    %v49 = vld [vmem:[%s47] ss:$-56 sm:%s48]
    %s50 = scalar_lea.vmem %s0, 61
    %v51 = vld [vmem:[%s50] sm:$0x4]
    %vm52 = vcmask 1042434
    %v53 = vsel %vm52, %v51, %v49
    %s54 = scalar_lea.vmem %s0, 92
    %v55 = vld [vmem:[%s54] sm:$0x8]
    %vm56 = vcmask 1043459
    %v57 = vsel %vm56, %v55, %v53
    %58 = vrot.lane.b32.xlu0 %v57, 112
    %v59 = vpop.permute.xlu0 %58
    %vm60 = vcmask 1048448
    %s61 = scalar_lea.vmem [#allocation0], 18
    %62 = vst.msk [vmem:[%s61] ss:$6 sm:$0x3] %vm60, %v59
    %s63 = scalar_lea.vmem [#allocation0], 23
    %64 = vst.msk [vmem:[%s63] sm:$0xc] %vm60, %v59
    %s65 = scalar_lea.vmem %s0, 6
    %v66 = vld [vmem:[%s65] sm:$0x1]
    %s67 = scalar_lea.vmem %s0, 37
    %v68 = vld [vmem:[%s67] sm:$0x2]
    %vm69 = vcmask 1041409
    %v70 = vsel %vm69, %v68, %v66
    %s71 = scalar_lea.vmem %s0, 182
    %s72 = smov 12
    %v73 = vld [vmem:[%s71] ss:$-56 sm:%s72]
    %vm74 = vcmask 1043458
    %v75 = vsel %vm74, %v73, %v70
    %s76 = scalar_lea.vmem %s0, 42
    %v77 = vld [vmem:[%s76] sm:$0x10]
    %vm78 = vcmask 1044484
    %v79 = vsel %vm78, %v77, %v75
    %s80 = scalar_lea.vmem %s0, 358
    %s81 = smov 96
    %v82 = vld [vmem:[%s80] ss:$-56 sm:%s81]
    %vm83 = vcmask 1046533
    %v84 = vsel %vm83, %v82, %v79
    %s85 = scalar_lea.vmem %s0, 47
    %v86 = vld [vmem:[%s85] sm:$0x80]
    %vm87 = vcmask 1047559
    %v88 = vsel %vm87, %v86, %v84
    %89 = vrot.lane.b32.xlu0 %v88, 96
    %v90 = vpop.permute.xlu0 %89
    %vm91 = vcmask 917248
    %92 = vst.msk [vmem:[#allocation0] sm:$0x7] %vm91, %v90
    %s93 = scalar_lea.vmem [#allocation0], 5
    %94 = vst.msk [vmem:[%s93] sm:$0x38] %vm91, %v90
    %s95 = scalar_lea.vmem [#allocation0], 10
    %96 = vst.msk [vmem:[%s95] sm:$0xc0] %vm91, %v90
    %s97 = scalar_lea.vmem %s0, 86
    %s98 = smov 3
    %v99 = vld [vmem:[%s97] ss:$-56 sm:%s98]
    %s100 = scalar_lea.vmem %s0, 60
    %v101 = vld [vmem:[%s100] sm:$0x4]
    %vm102 = vcmask 1042434
    %v103 = vsel %vm102, %v101, %v99
    %s104 = scalar_lea.vmem %s0, 91
    %v105 = vld [vmem:[%s104] sm:$0x8]
    %vm106 = vcmask 1043459
    %v107 = vsel %vm106, %v105, %v103
    %108 = vrot.lane.b32.xlu0 %v107, 96
    %v109 = vpop.permute.xlu0 %108
    %vm110 = vcmask 917248
    %s111 = scalar_lea.vmem [#allocation0], 18
    %112 = vst.msk [vmem:[%s111] ss:$6 sm:$0x3] %vm110, %v109
    %s113 = scalar_lea.vmem [#allocation0], 23
    %114 = vst.msk [vmem:[%s113] sm:$0xc] %vm110, %v109
    %s115 = scalar_lea.vmem %s0, 5
    %v116 = vld [vmem:[%s115] sm:$0x1]
    %s117 = scalar_lea.vmem %s0, 36
    %v118 = vld [vmem:[%s117] sm:$0x2]
    %vm119 = vcmask 1041409
    %v120 = vsel %vm119, %v118, %v116
    %s121 = scalar_lea.vmem %s0, 181
    %s122 = smov 12
    %v123 = vld [vmem:[%s121] ss:$-56 sm:%s122]
    %vm124 = vcmask 1043458
    %v125 = vsel %vm124, %v123, %v120
    %s126 = scalar_lea.vmem %s0, 41
    %v127 = vld [vmem:[%s126] sm:$0x10]
    %vm128 = vcmask 1044484
    %v129 = vsel %vm128, %v127, %v125
    %s130 = scalar_lea.vmem %s0, 357
    %s131 = smov 96
    %v132 = vld [vmem:[%s130] ss:$-56 sm:%s131]
    %vm133 = vcmask 1046533
    %v134 = vsel %vm133, %v132, %v129
    %s135 = scalar_lea.vmem %s0, 46
    %v136 = vld [vmem:[%s135] sm:$0x80]
    %vm137 = vcmask 1047559
    %v138 = vsel %vm137, %v136, %v134
    %139 = vrot.lane.b32.xlu0 %v138, 80
    %v140 = vpop.permute.xlu0 %139
    %vm141 = vcmask 786048
    %142 = vst.msk [vmem:[#allocation0] sm:$0x7] %vm141, %v140
    %s143 = scalar_lea.vmem [#allocation0], 5
    %144 = vst.msk [vmem:[%s143] sm:$0x38] %vm141, %v140
    %s145 = scalar_lea.vmem [#allocation0], 10
    %146 = vst.msk [vmem:[%s145] sm:$0xc0] %vm141, %v140
    %s147 = scalar_lea.vmem %s0, 85
    %s148 = smov 3
    %v149 = vld [vmem:[%s147] ss:$-56 sm:%s148]
    %s150 = scalar_lea.vmem %s0, 59
    %v151 = vld [vmem:[%s150] sm:$0x4]
    %vm152 = vcmask 1042434
    %v153 = vsel %vm152, %v151, %v149
    %s154 = scalar_lea.vmem %s0, 90
    %v155 = vld [vmem:[%s154] sm:$0x8]
    %vm156 = vcmask 1043459
    %v157 = vsel %vm156, %v155, %v153
    %158 = vrot.lane.b32.xlu0 %v157, 80
    %v159 = vpop.permute.xlu0 %158
    %vm160 = vcmask 786048
    %s161 = scalar_lea.vmem [#allocation0], 18
    %162 = vst.msk [vmem:[%s161] ss:$6 sm:$0x3] %vm160, %v159
    %s163 = scalar_lea.vmem [#allocation0], 23
    %164 = vst.msk [vmem:[%s163] sm:$0xc] %vm160, %v159
    %s165 = scalar_lea.vmem %s0, 4
    %v166 = vld [vmem:[%s165] sm:$0x1]
    %s167 = scalar_lea.vmem %s0, 35
    %v168 = vld [vmem:[%s167] sm:$0x2]
    %vm169 = vcmask 1041409
    %v170 = vsel %vm169, %v168, %v166
    %s171 = scalar_lea.vmem %s0, 180
    %s172 = smov 12
    %v173 = vld [vmem:[%s171] ss:$-56 sm:%s172]
    %vm174 = vcmask 1043458
    %v175 = vsel %vm174, %v173, %v170
    %s176 = scalar_lea.vmem %s0, 40
    %v177 = vld [vmem:[%s176] sm:$0x10]
    %vm178 = vcmask 1044484
    %v179 = vsel %vm178, %v177, %v175
    %s180 = scalar_lea.vmem %s0, 356
    %s181 = smov 96
    %v182 = vld [vmem:[%s180] ss:$-56 sm:%s181]
    %vm183 = vcmask 1046533
    %v184 = vsel %vm183, %v182, %v179
    %s185 = scalar_lea.vmem %s0, 45
    %v186 = vld [vmem:[%s185] sm:$0x80]
    %vm187 = vcmask 1047559
    %v188 = vsel %vm187, %v186, %v184
    %189 = vrot.lane.b32.xlu0 %v188, 64
    %v190 = vpop.permute.xlu0 %189
    %vm191 = vcmask 654848
    %192 = vst.msk [vmem:[#allocation0] sm:$0x7] %vm191, %v190
    %s193 = scalar_lea.vmem [#allocation0], 5
    %194 = vst.msk [vmem:[%s193] sm:$0x38] %vm191, %v190
    %s195 = scalar_lea.vmem [#allocation0], 10
    %196 = vst.msk [vmem:[%s195] sm:$0xc0] %vm191, %v190
    %s197 = scalar_lea.vmem %s0, 84
    %s198 = smov 3
    %v199 = vld [vmem:[%s197] ss:$-56 sm:%s198]
    %s200 = scalar_lea.vmem %s0, 58
    %v201 = vld [vmem:[%s200] sm:$0x4]
    %vm202 = vcmask 1042434
    %v203 = vsel %vm202, %v201, %v199
    %s204 = scalar_lea.vmem %s0, 89
    %v205 = vld [vmem:[%s204] sm:$0x8]
    %vm206 = vcmask 1043459
    %v207 = vsel %vm206, %v205, %v203
    %208 = vrot.lane.b32.xlu0 %v207, 64
    %v209 = vpop.permute.xlu0 %208
    %vm210 = vcmask 654848
    %s211 = scalar_lea.vmem [#allocation0], 18
    %212 = vst.msk [vmem:[%s211] ss:$6 sm:$0x3] %vm210, %v209
    %s213 = scalar_lea.vmem [#allocation0], 23
    %214 = vst.msk [vmem:[%s213] sm:$0xc] %vm210, %v209
    %s215 = scalar_lea.vmem %s0, 3
    %v216 = vld [vmem:[%s215] sm:$0x1]
    %s217 = scalar_lea.vmem %s0, 34
    %v218 = vld [vmem:[%s217] sm:$0x2]
    %vm219 = vcmask 1041409
    %v220 = vsel %vm219, %v218, %v216
    %s221 = scalar_lea.vmem %s0, 179
    %s222 = smov 12
    %v223 = vld [vmem:[%s221] ss:$-56 sm:%s222]
    %vm224 = vcmask 1043458
    %v225 = vsel %vm224, %v223, %v220
    %s226 = scalar_lea.vmem %s0, 39
    %v227 = vld [vmem:[%s226] sm:$0x10]
    %vm228 = vcmask 1044484
    %v229 = vsel %vm228, %v227, %v225
    %s230 = scalar_lea.vmem %s0, 355
    %s231 = smov 96
    %v232 = vld [vmem:[%s230] ss:$-56 sm:%s231]
    %vm233 = vcmask 1046533
    %v234 = vsel %vm233, %v232, %v229
    %s235 = scalar_lea.vmem %s0, 44
    %v236 = vld [vmem:[%s235] sm:$0x80]
    %vm237 = vcmask 1047559
    %v238 = vsel %vm237, %v236, %v234
    %239 = vrot.lane.b32.xlu0 %v238, 48
    %v240 = vpop.permute.xlu0 %239
    %vm241 = vcmask 523648
    %242 = vst.msk [vmem:[#allocation0] sm:$0x7] %vm241, %v240
    %s243 = scalar_lea.vmem [#allocation0], 5
    %244 = vst.msk [vmem:[%s243] sm:$0x38] %vm241, %v240
    %s245 = scalar_lea.vmem [#allocation0], 10
    %246 = vst.msk [vmem:[%s245] sm:$0xc0] %vm241, %v240
    %s247 = scalar_lea.vmem %s0, 83
    %s248 = smov 3
    %v249 = vld [vmem:[%s247] ss:$-56 sm:%s248]
    %s250 = scalar_lea.vmem %s0, 57
    %v251 = vld [vmem:[%s250] sm:$0x4]
    %vm252 = vcmask 1042434
    %v253 = vsel %vm252, %v251, %v249
    %s254 = scalar_lea.vmem %s0, 88
    %v255 = vld [vmem:[%s254] sm:$0x8]
    %vm256 = vcmask 1043459
    %v257 = vsel %vm256, %v255, %v253
    %258 = vrot.lane.b32.xlu0 %v257, 48
    %v259 = vpop.permute.xlu0 %258
    %vm260 = vcmask 523648
    %s261 = scalar_lea.vmem [#allocation0], 18
    %262 = vst.msk [vmem:[%s261] ss:$6 sm:$0x3] %vm260, %v259
    %s263 = scalar_lea.vmem [#allocation0], 23
    %264 = vst.msk [vmem:[%s263] sm:$0xc] %vm260, %v259
    %s265 = scalar_lea.vmem %s0, 2
    %v266 = vld [vmem:[%s265] sm:$0x1]
    %s267 = scalar_lea.vmem %s0, 33
    %v268 = vld [vmem:[%s267] sm:$0x2]
    %vm269 = vcmask 1041409
    %v270 = vsel %vm269, %v268, %v266
    %s271 = scalar_lea.vmem %s0, 178
    %s272 = smov 12
    %v273 = vld [vmem:[%s271] ss:$-56 sm:%s272]
    %vm274 = vcmask 1043458
    %v275 = vsel %vm274, %v273, %v270
    %s276 = scalar_lea.vmem %s0, 38
    %v277 = vld [vmem:[%s276] sm:$0x10]
    %vm278 = vcmask 1044484
    %v279 = vsel %vm278, %v277, %v275
    %s280 = scalar_lea.vmem %s0, 354
    %s281 = smov 96
    %v282 = vld [vmem:[%s280] ss:$-56 sm:%s281]
    %vm283 = vcmask 1046533
    %v284 = vsel %vm283, %v282, %v279
    %s285 = scalar_lea.vmem %s0, 43
    %v286 = vld [vmem:[%s285] sm:$0x80]
    %vm287 = vcmask 1047559
    %v288 = vsel %vm287, %v286, %v284
    %289 = vrot.lane.b32.xlu0 %v288, 32
    %v290 = vpop.permute.xlu0 %289
    %vm291 = vcmask 392448
    %292 = vst.msk [vmem:[#allocation0] sm:$0x7] %vm291, %v290
    %s293 = scalar_lea.vmem [#allocation0], 5
    %294 = vst.msk [vmem:[%s293] sm:$0x38] %vm291, %v290
    %s295 = scalar_lea.vmem [#allocation0], 10
    %296 = vst.msk [vmem:[%s295] sm:$0xc0] %vm291, %v290
    %s297 = scalar_lea.vmem %s0, 82
    %s298 = smov 3
    %v299 = vld [vmem:[%s297] ss:$-56 sm:%s298]
    %s300 = scalar_lea.vmem %s0, 56
    %v301 = vld [vmem:[%s300] sm:$0x4]
    %vm302 = vcmask 1042434
    %v303 = vsel %vm302, %v301, %v299
    %s304 = scalar_lea.vmem %s0, 87
    %v305 = vld [vmem:[%s304] sm:$0x8]
    %vm306 = vcmask 1043459
    %v307 = vsel %vm306, %v305, %v303
    %308 = vrot.lane.b32.xlu0 %v307, 32
    %v309 = vpop.permute.xlu0 %308
    %vm310 = vcmask 392448
    %s311 = scalar_lea.vmem [#allocation0], 18
    %312 = vst.msk [vmem:[%s311] ss:$6 sm:$0x3] %vm310, %v309
    %s313 = scalar_lea.vmem [#allocation0], 23
    %314 = vst.msk [vmem:[%s313] sm:$0xc] %vm310, %v309
    %s315 = scalar_lea.vmem %s0, 1
    %v316 = vld [vmem:[%s315] sm:$0x1]
    %s317 = scalar_lea.vmem %s0, 32
    %v318 = vld [vmem:[%s317] sm:$0x2]
    %vm319 = vcmask 1041409
    %v320 = vsel %vm319, %v318, %v316
    %s321 = scalar_lea.vmem %s0, 177
    %s322 = smov 12
    %v323 = vld [vmem:[%s321] ss:$-56 sm:%s322]
    %vm324 = vcmask 1043458
    %v325 = vsel %vm324, %v323, %v320
    %s326 = scalar_lea.vmem %s0, 37
    %v327 = vld [vmem:[%s326] sm:$0x10]
    %vm328 = vcmask 1044484
    %v329 = vsel %vm328, %v327, %v325
    %s330 = scalar_lea.vmem %s0, 353
    %s331 = smov 96
    %v332 = vld [vmem:[%s330] ss:$-56 sm:%s331]
    %vm333 = vcmask 1046533
    %v334 = vsel %vm333, %v332, %v329
    %s335 = scalar_lea.vmem %s0, 42
    %v336 = vld [vmem:[%s335] sm:$0x80]
    %vm337 = vcmask 1047559
    %v338 = vsel %vm337, %v336, %v334
    %339 = vrot.lane.b32.xlu0 %v338, 16
    %v340 = vpop.permute.xlu0 %339
    %vm341 = vcmask 261248
    %342 = vst.msk [vmem:[#allocation0] sm:$0x7] %vm341, %v340
    %s343 = scalar_lea.vmem [#allocation0], 5
    %344 = vst.msk [vmem:[%s343] sm:$0x38] %vm341, %v340
    %s345 = scalar_lea.vmem [#allocation0], 10
    %346 = vst.msk [vmem:[%s345] sm:$0xc0] %vm341, %v340
    %s347 = scalar_lea.vmem %s0, 81
    %s348 = smov 3
    %v349 = vld [vmem:[%s347] ss:$-56 sm:%s348]
    %s350 = scalar_lea.vmem %s0, 55
    %v351 = vld [vmem:[%s350] sm:$0x4]
    %vm352 = vcmask 1042434
    %v353 = vsel %vm352, %v351, %v349
    %s354 = scalar_lea.vmem %s0, 86
    %v355 = vld [vmem:[%s354] sm:$0x8]
    %vm356 = vcmask 1043459
    %v357 = vsel %vm356, %v355, %v353
    %358 = vrot.lane.b32.xlu0 %v357, 16
    %v359 = vpop.permute.xlu0 %358
    %vm360 = vcmask 261248
    %s361 = scalar_lea.vmem [#allocation0], 18
    %362 = vst.msk [vmem:[%s361] ss:$6 sm:$0x3] %vm360, %v359
    %s363 = scalar_lea.vmem [#allocation0], 23
    %364 = vst.msk [vmem:[%s363] sm:$0xc] %vm360, %v359
    %s366 = sshll.u32 1, 4
    %s367 = ssub.s32 %s366, 1
    %v369 = vld [vmem:[#allocation0] sm:%s367]
    %s370 = sshll.u32 1, 4
    %s371 = ssub.s32 %s370, 1
    %372 = vst [vmem:[%s1] sm:%s371] %v369
    %s373 = scalar_lea.vmem [#allocation0], 8
    %v374 = vld [vmem:[%s373] sm:%s367]
    %s375 = sshll.u32 1, 4
    %s376 = ssub.s32 %s375, 1
    %s377 = scalar_lea.vmem %s1, 4
    %378 = vst [vmem:[%s377] sm:%s376] %v374
    %s379 = scalar_lea.vmem [#allocation0], 16
    %v380 = vld [vmem:[%s379] sm:%s367]
    %s381 = sshll.u32 1, 4
    %s382 = ssub.s32 %s381, 1
    %s383 = smul.addr 4, 2
    %s384 = scalar_lea.vmem %s1, %s383
    %385 = vst [vmem:[%s384] sm:%s382] %v380
    %s386 = scalar_lea.vmem [#allocation0], 24
    %v387 = vld [vmem:[%s386] sm:%s367]
    %s388 = sshll.u32 1, 4
    %s389 = ssub.s32 %s388, 1
    %s390 = smul.addr 4, 3
    %s391 = scalar_lea.vmem %s1, %s390
    %392 = vst [vmem:[%s391] sm:%s389] %v387

// kernel: phong_shader_forward.1
$region0: #{phong_shader_forward.1}
  #allocation0 [shape = 'u32[]', space=smem, size = 0x4, offset = 0x4, fixed_abs, tag = 'smem constant byte address 0x4 - core index']
  #allocation1 [shape = 'u32[144,128]{1,0:T(1,128)}', space=vmem, size = 0x12000, scoped, tag = 'internal scratch']
  %s0 = inlined_call_operand.vmem [shape: f32[9,8,128], index: 0, kind: input, shape index: {}]
  %s1 = inlined_call_operand.vmem [shape: f32[3,8,128], index: 1, kind: output, shape index: {}]
  %s2 = sld [smem:[#allocation0]]
  $region14: #{phong_shader_forward.1} parent=0
    _
  %s4 = ssub.s32 1, %s2
  %s5 = scalar_select 0, %s4, %s2
  // Predicated region
  $region2: #{phong_shader_forward.1} parent=0 // pred_check
    _
  $region3: #{phong_shader_forward.1} parent=0 // pred_check_branch
    %7 = sbr.rel (0) target = $region5
  $region4: #{phong_shader_forward.1} parent=0 // pred_region
    _
  $region5: #{phong_shader_forward.1} parent=0 // pred_fallthru
    _
  %v8 = vld [vmem:[%s0] sm:$0xff]
  %s9 = sadd.s32 0, 8
  %s10 = scalar_lea.vmem %s0, %s9
  %v11 = vld [vmem:[%s10] sm:$0xff]
  %s12 = sadd.s32 0, 16
  %s13 = scalar_lea.vmem %s0, %s12
  %v14 = vld [vmem:[%s13] sm:$0xff]
  %s15 = sadd.s32 0, 24
  %s16 = scalar_lea.vmem %s0, %s15
  %v17 = vld [vmem:[%s16] sm:$0xff]
  %s18 = sadd.s32 0, 32
  %s19 = scalar_lea.vmem %s0, %s18
  %v20 = vld [vmem:[%s19] sm:$0xff]
  %s21 = sadd.s32 0, 40
  %s22 = scalar_lea.vmem %s0, %s21
  %v23 = vld [vmem:[%s22] sm:$0xff]
  %s24 = sadd.s32 0, 48
  %s25 = scalar_lea.vmem %s0, %s24
  %v26 = vld [vmem:[%s25] sm:$0xff]
  %s27 = sadd.s32 0, 56
  %s28 = scalar_lea.vmem %s0, %s27
  %v29 = vld [vmem:[%s28] sm:$0xff]
  %s30 = sadd.s32 0, 64
  %s31 = scalar_lea.vmem %s0, %s30
  %v32 = vld [vmem:[%s31] sm:$0xff]
  %v33 = vmul.f32 %v17, %v17
  %v34 = vmul.f32 %v20, %v20
  %v35 = vadd.f32 %v33, %v34
  %v36 = vmul.f32 %v23, %v23
  %v37 = vadd.f32 %v35, %v36
  %v38 = vmax.f32 %v37, 1e-12
  %v39 = vrsqrt.pop %v38
  %v40 = vmul.f32 %v17, %v39
  %v41 = vmul.f32 %v20, %v39
  %v42 = vmul.f32 %v23, %v39
  %v43 = vsub.f32 0.0, %v8
  %v44 = vsub.f32 1.0, %v11
  %v45 = vsub.f32 0.0, %v14
  %v46 = vmul.f32 %v43, %v43
  %v47 = vmul.f32 %v44, %v44
  %v48 = vadd.f32 %v46, %v47
  %v49 = vmul.f32 %v45, %v45
  %v50 = vadd.f32 %v48, %v49
  %v51 = vmax.f32 %v50, 1e-12
  %v52 = vrsqrt.pop %v51
  %v53 = vmul.f32 %v43, %v52
  %v54 = vmul.f32 %v44, %v52
  %v55 = vmul.f32 %v45, %v52
  %v56 = vsub.f32 0.0, %v11
  %v57 = vmul.f32 %v56, %v56
  %v58 = vadd.f32 %v46, %v57
  %v59 = vadd.f32 %v58, %v49
  %v60 = vmax.f32 %v59, 1e-12
  %v61 = vrsqrt.pop %v60
  %v62 = vmul.f32 %v43, %v61
  %v63 = vmul.f32 %v56, %v61
  %v64 = vmul.f32 %v45, %v61
  %v65 = vmul.f32 %v40, %v53
  %v66 = vmul.f32 %v41, %v54
  %v67 = vadd.f32 %v65, %v66
  %v68 = vmul.f32 %v42, %v55
  %v69 = vadd.f32 %v67, %v68
  %v70 = vmax.f32 %v69, 0.0
  %v71 = vmul.f32 %v69, 2.0
  %v72 = vmul.f32 %v71, %v40
  %v73 = vsub.f32 %v72, %v53
  %v74 = vmul.f32 %v71, %v41
  %v75 = vsub.f32 %v74, %v54
  %v76 = vmul.f32 %v71, %v42
  %v77 = vsub.f32 %v76, %v55
  %v78 = vmul.f32 %v62, %v73
  %v79 = vmul.f32 %v63, %v75
  %v80 = vadd.f32 %v78, %v79
  %v81 = vmul.f32 %v64, %v77
  %v82 = vadd.f32 %v80, %v81
  %vm83 = vcmp.gt.f32.partialorder %v69, 0.0
  %v84 = vmax.f32 %v82, 0.0
  %v85 = vsel %vm83, %v84, 0.0
  %v86 = vmul.f32 %v85, %v85
  %v87 = vmul.f32 %v86, %v86
  %v88 = vmul.f32 %v87, %v87
  %v89 = vmul.f32 %v88, %v88
  %v90 = vmul.f32 %v89, %v89
  %v91 = vmul.f32 %v90, %v90
  %v92 = vmul.f32 %v70, 0.3
  %v93 = vmul.f32 %v91, 0.2
  %v94 = vadd.f32 %v92, 0.5
  %v95 = vmul.f32 %v94, %v26
  %v96 = vadd.f32 %v95, %v93
  %97 = vst [vmem:[%s1] sm:$0xff] %v96
  %v98 = vmul.f32 %v94, %v29
  %v99 = vadd.f32 %v98, %v93
  %s100 = scalar_lea.vmem %s1, %s9
  %101 = vst [vmem:[%s100] sm:$0xff] %v99
  %v102 = vmul.f32 %v94, %v32
  %v103 = vadd.f32 %v102, %v93
  %s104 = scalar_lea.vmem %s1, %s12
  %105 = vst [vmem:[%s104] sm:$0xff] %v103
  // Predicated region
  $region6: #{phong_shader_forward.1} parent=0 // pred_check
    _
  $region7: #{phong_shader_forward.1} parent=0 // pred_check_branch
    %107 = sbr.rel (0) target = $region9
  $region8: #{phong_shader_forward.1} parent=0 // pred_region
    _
  $region9: #{phong_shader_forward.1} parent=0 // pred_fallthru
    _
  // Predicated region
  $region10: #{phong_shader_forward.1} parent=0 // pred_check
    _
  $region11: #{phong_shader_forward.1} parent=0 // pred_check_branch
    %109 = sbr.rel (0) target = $region13
  $region12: #{phong_shader_forward.1} parent=0 // pred_region
    _
  $region13: #{phong_shader_forward.1} parent=0 // pred_fallthru
    _

</llo_original>
